<compile_context>
chip_gen: v7x
topology: tpu7x:2x2x1
jax: 0.10.0
libtpu: 0.0.40
codegen_flags: <defaults>
</compile_context>

<pallas_src>
import math

import jax
import jax.numpy as jnp
from jax import lax
from jax.experimental import pallas as pl
from jax.experimental.pallas import tpu as pltpu

_LANES = 128


def _round_up(x, m):
    return ((x + m - 1) // m) * m


def gaussian_mlp_kernel(a_t_ref, b_ref, w1_ref, b1_ref, wh_ref, bh_ref, out_ref):
    """One batch tile. a_t_ref: [N, tb] (feature-major), b_ref: [tb, M] (row-major).

    Weights are in torch orientation ([out, in]); both matmuls produce
    feature-major [out_features, tb] results so the batch dim lives on lanes.
    """
    n = a_t_ref.shape[0]

    # hidden layer:  h[H, tb] = tanh(W1[H, M] . b[tb, M]^T + b1)
    # ("NT" contraction on the last dim of both operands -> no transpose op;
    #  MXU matmul, f32 accumulate; tanh on the EUP over lane-dense vregs)
    z1 = lax.dot_general(w1_ref[...], b_ref[...],
                         dimension_numbers=(((1,), (1,)), ((), ())),
                         preferred_element_type=jnp.float32)
    h = jnp.tanh(z1 + b1_ref[...])                    # [H, tb] f32

    # fused heads: heads[2N, tb] = Wh[2N, H] . h[H, tb] + bh   (one matmul)
    heads = lax.dot_general(wh_ref[...], h.astype(wh_ref.dtype),
                            dimension_numbers=(((1,), (0,)), ((), ())),
                            preferred_element_type=jnp.float32) + bh_ref[...]

    # mean / logvar split is a sublane slice; with n % 8 == 0 it falls on a
    # vreg boundary (addresses the review's mid-vreg lane-slice concern).
    mean = heads[:n, :]                               # [N, tb]
    logvar = heads[n:, :]                             # [N, tb]

    diff = a_t_ref[...] - mean                        # [N, tb] (a kept f32)
    inv_var = jnp.exp(-logvar)                        # EUP; replaces the divide
                                                      # and the exp->log round trip
    # logp = const - 1/2 * sum_j (diff^2 * exp(-logvar) + logvar)
    red = jnp.sum(diff * diff * inv_var + logvar, axis=0, keepdims=True)  # [1, tb]
    const = jnp.float32(-0.5 * n * math.log(2.0 * math.pi))
    out_ref[...] = const - 0.5 * red                  # lane-dense [1, tb] store


def _choose_batch_tile(batch, block_b, dim_a, dim_b, dim_h, itemsize_b, *,
                       min_steps=2, min_tile=1024, vmem_budget=24 << 20):
    """Pick (batch tile, padded batch)."""
    bp = _round_up(batch, _LANES)
    tb = min(_round_up(block_b, _LANES), bp)

    # v7x: once the batch is big enough, leave >= min_steps grid steps so the
    # "parallel" axis can shard across the two TensorCores (no-op on v5e/v6e,
    # which prefer the biggest tile — hence the min_tile floor).
    if bp >= min_steps * min_tile:
        tb = min(tb, max(min_tile, _round_up(pl.cdiv(bp, min_steps), _LANES)))

    # VMEM budget: double-buffered a_t/b/out blocks + f32 intermediates
    # (h, heads and a couple of temps). Shrink the tile if it would not fit
    # within a conservative 24 MiB (safe even on v7x's 64 MiB / 32 MiB limits).
    per_row = 2 * (dim_a * 4 + dim_b * itemsize_b + 4)       # pipelined blocks
    per_row += 2 * (dim_h + 2 * dim_a) * 4                   # h, heads (+temps)
    max_tb = max(_LANES, (vmem_budget // per_row) // _LANES * _LANES)
    tb = min(tb, max_tb)

    bp = _round_up(bp, tb)      # grid divides evenly; inputs zero-padded to bp
    return tb, bp


def gaussian_mlp_log_prob(a, b, params, *, block_b=8192, mxu_dtype=None,
                          input_buffers=None):
    """log p(a|b) for the GaussianMLP.  a: [B, dim_a], b: [B, dim_b] -> [B].

    block_b:       max batch rows per grid step (default 8192; rounded to a
                   multiple of 128 lanes; shrunk only to keep >=2 grid steps on
                   large batches for v7x, or to respect the VMEM budget).
    mxu_dtype:     optional dtype (e.g. jnp.bfloat16) for the MXU operands
                   b / W1 / Wh — ~33% fewer input HBM bytes, f32 accumulation
                   kept; expect ~1e-2-level deltas vs. the f32 reference.
    input_buffers: set to 3 (pl.Buffered(3)) if an xprof trace shows exposed
                   input DMA on the a/b streams (mainly v5e); default keeps the
                   standard double-buffered pipeline.
    """
    w1, b1, wm, bm, wv, bv = params               # torch orientation: [out, in]
    B, dim_a = a.shape
    dim_b = b.shape[1]
    dim_h = w1.shape[0]

    # Fused heads: one [2N, H] weight / [2N, 1] bias (mean rows, then logvar).
    wh = jnp.concatenate([wm, wv], axis=0)                                # [2N, H]
    bh = jnp.concatenate([bm, bv], axis=0)[:, None].astype(jnp.float32)   # [2N, 1]
    b1c = b1[:, None].astype(jnp.float32)                                 # [H, 1]

    b_cast = b if mxu_dtype is None else b.astype(mxu_dtype)
    w1_cast = w1 if mxu_dtype is None else w1.astype(mxu_dtype)
    wh_cast = wh if mxu_dtype is None else wh.astype(mxu_dtype)

    tb, bp = _choose_batch_tile(B, block_b, dim_a, dim_b, dim_h,
                                jnp.dtype(b_cast.dtype).itemsize)

    # Zero-pad the ragged batch tail so the last block never reads garbage.
    if bp != B:
        a = jnp.pad(a, ((0, bp - B), (0, 0)))
        b_cast = jnp.pad(b_cast, ((0, bp - B), (0, 0)))
    a_t = a.astype(jnp.float32).T                 # [N, bp] feature-major (f32)

    grid = (bp // tb,)

    def stream_spec(shape, index_map):
        if input_buffers is None:
            return pl.BlockSpec(shape, index_map)
        return pl.BlockSpec(shape, index_map,
                            pipeline_mode=pl.Buffered(input_buffers))

    cost = pl.CostEstimate(
        flops=2 * bp * dim_h * (dim_b + 2 * dim_a),
        transcendentals=bp * (dim_h + dim_a),                   # tanh + exp
        bytes_accessed=(bp * dim_b * b_cast.dtype.itemsize      # b
                        + bp * dim_a * 4                        # a_t
                        + bp * 4                                # out
                        + (w1_cast.size + wh_cast.size) * w1_cast.dtype.itemsize
                        + (b1c.size + bh.size) * 4))

    out = pl.pallas_call(
        gaussian_mlp_kernel,
        out_shape=jax.ShapeDtypeStruct((1, bp), jnp.float32),
        grid=grid,
        in_specs=[
            stream_spec((dim_a, tb), lambda i: (0, i)),          # a_t (batch on lanes)
            stream_spec((tb, dim_b), lambda i: (i, 0)),          # b   (batch-tiled)
            pl.BlockSpec((dim_h, dim_b), lambda i: (0, 0)),      # W1  (VMEM-resident)
            pl.BlockSpec((dim_h, 1), lambda i: (0, 0)),          # b1
            pl.BlockSpec((2 * dim_a, dim_h), lambda i: (0, 0)),  # W_heads
            pl.BlockSpec((2 * dim_a, 1), lambda i: (0, 0)),      # b_heads
        ],
        out_specs=pl.BlockSpec((1, tb), lambda i: (0, i)),       # lane-dense rows
        compiler_params=pltpu.CompilerParams(
            dimension_semantics=("parallel",)),                  # megacore / v7x
        cost_estimate=cost,
    )(a_t, b_cast, w1_cast, b1c, wh_cast, bh)
    return out[0, :B]


def init_params(key, dim_a, dim_b, dim_hidden):
    """Deterministic init mimicking torch.nn.Linear (U(+/- 1/sqrt(fan_in))).
    Weights stored in the torch orientation: [out_features, in_features]."""
    k = jax.random.split(key, 6)

    def lin(kw, kb, fan_in, fan_out):
        bound = 1.0 / math.sqrt(fan_in)
        w = jax.random.uniform(kw, (fan_out, fan_in), jnp.float32, -bound, bound)
        bb = jax.random.uniform(kb, (fan_out,), jnp.float32, -bound, bound)
        return w, bb

    w1, b1 = lin(k[0], k[1], dim_b, dim_hidden)
    wm, bm = lin(k[2], k[3], dim_hidden, dim_a)
    wv, bv = lin(k[4], k[5], dim_hidden, dim_a)
    return (w1, b1, wm, bm, wv, bv)


def reference_log_prob(a, b, params):
    """Pure-JAX reference matching the PyTorch forward (exp, log and divide)."""
    w1, b1, wm, bm, wv, bv = params
    h = jnp.tanh(b @ w1.T + b1)
    mean = h @ wm.T + bm
    var = jnp.exp(h @ wv.T + bv)
    dim_a = a.shape[1]
    diff = a - mean
    exponent = -0.5 * jnp.sum(diff * diff / var, axis=1)
    return (-dim_a / 2.0 * jnp.log(jnp.float32(2.0 * jnp.pi))
            - 0.5 * jnp.sum(jnp.log(var), axis=1) + exponent)


if __name__ == "__main__":
    dim_a, dim_b, dim_hidden = 16, 32, 32
    key = jax.random.PRNGKey(0)
    ka, kb, kp = jax.random.split(key, 3)
    params = init_params(kp, dim_a, dim_b, dim_hidden)

    # 1) tiny batch: single (zero-padded) block, lane-dense output
    batch = 8
    a = jax.random.normal(ka, (batch, dim_a), jnp.float32)
    b = jax.random.normal(kb, (batch, dim_b), jnp.float32)
    logp = gaussian_mlp_log_prob(a, b, params)
    jax.block_until_ready(logp)
    ref = reference_log_prob(a, b, params)
    assert logp.shape == (batch,)
    assert jnp.allclose(logp, ref, atol=1e-4, rtol=1e-4), (logp, ref)

    # 2) larger batch with a small block_b: exercises the multi-step
    #    "parallel" grid and the tiled lane-dense output path
    batch2 = 512
    a2 = jax.random.normal(ka, (batch2, dim_a), jnp.float32)
    b2 = jax.random.normal(kb, (batch2, dim_b), jnp.float32)
    logp2 = gaussian_mlp_log_prob(a2, b2, params, block_b=128)
    jax.block_until_ready(logp2)
    ref2 = reference_log_prob(a2, b2, params)
    assert logp2.shape == (batch2,)
    assert jnp.allclose(logp2, ref2, atol=1e-4, rtol=1e-4), (logp2, ref2)

    # 3) bf16 MXU-operand path (recommended in production to cut HBM bytes);
    #    f32 accumulation kept, tolerance loosened for bf16 operands.
    logp3 = gaussian_mlp_log_prob(a2, b2, params, mxu_dtype=jnp.bfloat16)
    jax.block_until_ready(logp3)
    assert logp3.shape == (batch2,)
    assert bool(jnp.all(jnp.isfinite(logp3)))
    assert jnp.allclose(logp3, ref2, atol=0.5, rtol=5e-2), (logp3, ref2)

    print("KERNEL_OK")
</pallas_src>

<mosaic_0001>
module attributes {stable_mosaic.version = 11 : i64} {
  func.func @gaussian_mlp_kernel(%arg0: i32, %arg1: memref<16x128xf32, #tpu.memory_space<vmem>>, %arg2: memref<128x32xf32, #tpu.memory_space<vmem>>, %arg3: memref<32x32xf32, #tpu.memory_space<vmem>>, %arg4: memref<32x1xf32, #tpu.memory_space<vmem>>, %arg5: memref<32x32xf32, #tpu.memory_space<vmem>>, %arg6: memref<32x1xf32, #tpu.memory_space<vmem>>, %arg7: memref<1x128xf32, #tpu.memory_space<vmem>>) attributes {dimension_semantics = [#tpu.dimension_semantics<parallel>], iteration_bounds = array<i64: 1>, scalar_prefetch = 0 : i64, scratch_operands = 0 : i64, tpu.core_type = #tpu.core_type<tc>, window_params = [{transform_indices = @transform_0, window_bounds = array<i64: 16, 128>}, {transform_indices = @transform_1, window_bounds = array<i64: 128, 32>}, {pipeline_mode = #tpu.pipeline_mode<synchronous>, transform_indices = @transform_2, window_bounds = array<i64: 32, 32>}, {pipeline_mode = #tpu.pipeline_mode<synchronous>, transform_indices = @transform_3, window_bounds = array<i64: 32, 1>}, {pipeline_mode = #tpu.pipeline_mode<synchronous>, transform_indices = @transform_4, window_bounds = array<i64: 32, 32>}, {pipeline_mode = #tpu.pipeline_mode<synchronous>, transform_indices = @transform_5, window_bounds = array<i64: 32, 1>}, {transform_indices = @transform_6, window_bounds = array<i64: 1, 128>}]} {
    %c0 = arith.constant 0 : index
    %c0_0 = arith.constant 0 : index
    %0 = vector.load %arg3[%c0, %c0_0] : memref<32x32xf32, #tpu.memory_space<vmem>>, vector<32x32xf32>
    %c0_1 = arith.constant 0 : index
    %c0_2 = arith.constant 0 : index
    %1 = vector.load %arg2[%c0_1, %c0_2] : memref<128x32xf32, #tpu.memory_space<vmem>>, vector<128x32xf32>
    %cst = arith.constant dense<0.000000e+00> : vector<32x128xf32>
    %2 = tpu.matmul %0, %1, %cst {dimension_numbers = #tpu.dot_dimension_numbers<[1], [1], [0], [0], [0, 0, 1, 0], [], []>} : vector<32x32xf32>, vector<128x32xf32>, vector<32x128xf32> -> vector<32x128xf32>
    %c0_3 = arith.constant 0 : index
    %c0_4 = arith.constant 0 : index
    %3 = vector.load %arg4[%c0_3, %c0_4] : memref<32x1xf32, #tpu.memory_space<vmem>>, vector<32x1xf32>
    %4 = vector.broadcast %3 : vector<32x1xf32> to vector<32x128xf32>
    %5 = arith.addf %2, %4 : vector<32x128xf32>
    %6 = math.tanh %5 : vector<32x128xf32>
    %c0_5 = arith.constant 0 : index
    %c0_6 = arith.constant 0 : index
    %7 = vector.load %arg5[%c0_5, %c0_6] : memref<32x32xf32, #tpu.memory_space<vmem>>, vector<32x32xf32>
    %cst_7 = arith.constant dense<0.000000e+00> : vector<32x128xf32>
    %8 = tpu.matmul %7, %6, %cst_7 {dimension_numbers = #tpu.dot_dimension_numbers<[1], [0], [0], [1], [0, 0, 1, 1], [], []>} : vector<32x32xf32>, vector<32x128xf32>, vector<32x128xf32> -> vector<32x128xf32>
    %c0_8 = arith.constant 0 : index
    %c0_9 = arith.constant 0 : index
    %9 = vector.load %arg6[%c0_8, %c0_9] : memref<32x1xf32, #tpu.memory_space<vmem>>, vector<32x1xf32>
    %10 = vector.broadcast %9 : vector<32x1xf32> to vector<32x128xf32>
    %11 = arith.addf %8, %10 : vector<32x128xf32>
    %12 = vector.extract_strided_slice %11 {offsets = [0, 0], sizes = [16, 128], strides = [1, 1]} : vector<32x128xf32> to vector<16x128xf32>
    %13 = vector.extract_strided_slice %11 {offsets = [16, 0], sizes = [16, 128], strides = [1, 1]} : vector<32x128xf32> to vector<16x128xf32>
    %c0_10 = arith.constant 0 : index
    %c0_11 = arith.constant 0 : index
    %14 = vector.load %arg1[%c0_10, %c0_11] : memref<16x128xf32, #tpu.memory_space<vmem>>, vector<16x128xf32>
    %15 = arith.subf %14, %12 : vector<16x128xf32>
    %cst_12 = arith.constant 0.000000e+00 : f32
    %16 = vector.broadcast %cst_12 : f32 to vector<16x128xf32>
    %17 = arith.subf %16, %13 : vector<16x128xf32>
    %18 = math.exp %17 : vector<16x128xf32>
    %19 = arith.mulf %15, %15 : vector<16x128xf32>
    %20 = arith.mulf %19, %18 : vector<16x128xf32>
    %21 = arith.addf %20, %13 : vector<16x128xf32>
    %cst_13 = arith.constant dense<0.000000e+00> : vector<128xf32>
    %22 = vector.multi_reduction <add>, %21, %cst_13 [0] : vector<16x128xf32> to vector<128xf32>
    %23 = vector.shape_cast %22 : vector<128xf32> to vector<1x128xf32>
    %cst_14 = arith.constant 5.000000e-01 : f32
    %24 = vector.broadcast %cst_14 : f32 to vector<1x128xf32>
    %25 = arith.mulf %24, %23 : vector<1x128xf32>
    %cst_15 = arith.constant -14.7030163 : f32
    %26 = vector.broadcast %cst_15 : f32 to vector<1x128xf32>
    %27 = arith.subf %26, %25 : vector<1x128xf32>
    %c0_16 = arith.constant 0 : index
    %c0_17 = arith.constant 0 : index
    %28 = vector.load %arg7[%c0_16, %c0_17] : memref<1x128xf32, #tpu.memory_space<vmem>>, vector<1x128xf32>
    tpu.vector_store %arg7[%c0_16, %c0_17], %27 {strides = array<i32>} : memref<1x128xf32, #tpu.memory_space<vmem>>, vector<1x128xf32>,
    return
  }
  func.func @transform_0(%arg0: i32) -> (i32, i32) {
    %c0_i32 = arith.constant 0 : i32
    %c0_i32_0 = arith.constant 0 : i32
    return %c0_i32, %arg0 : i32, i32
  }
  func.func @transform_1(%arg0: i32) -> (i32, i32) {
    %c0_i32 = arith.constant 0 : i32
    %c0_i32_0 = arith.constant 0 : i32
    return %arg0, %c0_i32 : i32, i32
  }
  func.func @transform_2(%arg0: i32) -> (i32, i32) {
    %c0_i32 = arith.constant 0 : i32
    %c0_i32_0 = arith.constant 0 : i32
    %c0_i32_1 = arith.constant 0 : i32
    return %c0_i32, %c0_i32_0 : i32, i32
  }
  func.func @transform_3(%arg0: i32) -> (i32, i32) {
    %c0_i32 = arith.constant 0 : i32
    %c0_i32_0 = arith.constant 0 : i32
    %c0_i32_1 = arith.constant 0 : i32
    return %c0_i32, %c0_i32_0 : i32, i32
  }
  func.func @transform_4(%arg0: i32) -> (i32, i32) {
    %c0_i32 = arith.constant 0 : i32
    %c0_i32_0 = arith.constant 0 : i32
    %c0_i32_1 = arith.constant 0 : i32
    return %c0_i32, %c0_i32_0 : i32, i32
  }
  func.func @transform_5(%arg0: i32) -> (i32, i32) {
    %c0_i32 = arith.constant 0 : i32
    %c0_i32_0 = arith.constant 0 : i32
    %c0_i32_1 = arith.constant 0 : i32
    return %c0_i32, %c0_i32_0 : i32, i32
  }
  func.func @transform_6(%arg0: i32) -> (i32, i32) {
    %c0_i32 = arith.constant 0 : i32
    %c0_i32_0 = arith.constant 0 : i32
    return %c0_i32, %arg0 : i32, i32
  }
}

</mosaic_0001>

<llo_original>
// kernel: tpu_custom_call.1
$region0: #{tpu_custom_call.1}
  #allocation0 [shape = 'u32[]', space=smem, size = 0x4, offset = 0x4, fixed_abs, tag = 'smem constant byte address 0x4 - core index']
  #allocation1 [shape = 'u32[144,128]{1,0:T(1,128)}', space=vmem, size = 0x12000, scoped, tag = 'internal scratch']
  %s0 = inlined_call_operand.vmem [shape: f32[16,128], index: 0, kind: input, shape index: {}]
  %s1 = inlined_call_operand.vmem [shape: f32[128,32], index: 1, kind: input, shape index: {}]
  %s2 = inlined_call_operand.vmem [shape: f32[32,32], index: 2, kind: input, shape index: {}]
  %s3 = inlined_call_operand.vmem [shape: f32[32,1], index: 3, kind: input, shape index: {}]
  %s4 = inlined_call_operand.vmem [shape: f32[32,32], index: 4, kind: input, shape index: {}]
  %s5 = inlined_call_operand.vmem [shape: f32[32,1], index: 5, kind: input, shape index: {}]
  %s6 = inlined_call_operand.hbm [shape: f32[1,128], index: 6, kind: output, shape index: {}]
  %s7 = sld [smem:[#allocation0]]
  $region34: #{tpu_custom_call.1} parent=0
    _
  %s9 = ssub.s32 1, %s7
  %s10 = scalar_select 0, %s9, %s7
  $region1: #{tpu_custom_call.1} parent=0
    #allocation2 [shape = 'u8[512]{0}', space=vmem, size = 0x400, scoped, tag = 'output window, operand 0, single buffered']
    #allocation3 [shape = 's32[1]{0}', space=sflag, size = 0x4, scoped, tag = 'scoped memory for tpu_custom_call.1']
    %11 = vsyncpa [#allocation3], 0
    // Predicated region
    $region2: #{tpu_custom_call.1} parent=1 // pred_check
      _
    $region3: #{tpu_custom_call.1} parent=1 // pred_check_branch
      %13 = sbr.rel (0) target = $region5
    $region4: #{tpu_custom_call.1} parent=1 // pred_region
      _
    $region5: #{tpu_custom_call.1} parent=1 // pred_fallthru
      _
    // Predicated region
    $region6: #{tpu_custom_call.1} parent=1 // pred_check
      _
    $region7: #{tpu_custom_call.1} parent=1 // pred_check_branch
      %15 = sbr.rel (0) target = $region9
    $region8: #{tpu_custom_call.1} parent=1 // pred_region
      _
    $region9: #{tpu_custom_call.1} parent=1 // pred_fallthru
      _
    // Predicated region
    $region10: #{tpu_custom_call.1} parent=1 // pred_check
      _
    $region11: #{tpu_custom_call.1} parent=1 // pred_check_branch
      %17 = sbr.rel (0) target = $region13
    $region12: #{tpu_custom_call.1} parent=1 // pred_region
      _
    $region13: #{tpu_custom_call.1} parent=1 // pred_fallthru
      _
    // Predicated region
    $region14: #{tpu_custom_call.1} parent=1 // pred_check
      _
    $region15: #{tpu_custom_call.1} parent=1 // pred_check_branch
      %19 = sbr.rel (0) target = $region17
    $region16: #{tpu_custom_call.1} parent=1 // pred_region
      _
    $region17: #{tpu_custom_call.1} parent=1 // pred_fallthru
      _
    // Predicated region
    $region18: #{tpu_custom_call.1} parent=1 // pred_check
      _
    $region19: #{tpu_custom_call.1} parent=1 // pred_check_branch
      %21 = sbr.rel (0) target = $region21
    $region20: #{tpu_custom_call.1} parent=1 // pred_region
      _
    $region21: #{tpu_custom_call.1} parent=1 // pred_fallthru
      _
    // Predicated region
    $region22: #{tpu_custom_call.1} parent=1 // pred_check
      _
    $region23: #{tpu_custom_call.1} parent=1 // pred_check_branch
      %23 = sbr.rel (0) target = $region25
    $region24: #{tpu_custom_call.1} parent=1 // pred_region
      _
    $region25: #{tpu_custom_call.1} parent=1 // pred_fallthru
      _
    %v24 = vld [vmem:[%s2] sm:$0xff]
    %v25 = vld [vmem:[%s2 + $0x8] sm:$0xff]
    %v26 = vld [vmem:[%s2 + $0x10] sm:$0xff]
    %v27 = vld [vmem:[%s2 + $0x18] sm:$0xff]
    %v28 = vld [vmem:[%s1] sm:$0xff]
    %v29 = vld [vmem:[%s1 + $0x8] sm:$0xff]
    %v30 = vld [vmem:[%s1 + $0x10] sm:$0xff]
    %v31 = vld [vmem:[%s1 + $0x18] sm:$0xff]
    %v32 = vld [vmem:[%s1 + $0x20] sm:$0xff]
    %v33 = vld [vmem:[%s1 + $0x28] sm:$0xff]
    %v34 = vld [vmem:[%s1 + $0x30] sm:$0xff]
    %v35 = vld [vmem:[%s1 + $0x38] sm:$0xff]
    %v36 = vld [vmem:[%s1 + $0x40] sm:$0xff]
    %v37 = vld [vmem:[%s1 + $0x48] sm:$0xff]
    %v38 = vld [vmem:[%s1 + $0x50] sm:$0xff]
    %v39 = vld [vmem:[%s1 + $0x58] sm:$0xff]
    %v40 = vld [vmem:[%s1 + $0x60] sm:$0xff]
    %v41 = vld [vmem:[%s1 + $0x68] sm:$0xff]
    %v42 = vld [vmem:[%s1 + $0x70] sm:$0xff]
    %v43 = vld [vmem:[%s1 + $0x78] sm:$0xff]
    %v44 = vld [vmem:[%s3] sm:$0xff]
    %v45 = vld [vmem:[%s3 + $0x8] sm:$0xff]
    %v46 = vld [vmem:[%s3 + $0x10] sm:$0xff]
    %v47 = vld [vmem:[%s3 + $0x18] sm:$0xff]
    %49 = vset.pattern.permute.xlu0 0
    %50 = vperm.xlu0 %49, %v44
    %v51 = vpop.permute.xlu0 %50
    %54 = vset.pattern.permute.xlu0 0
    %55 = vperm.xlu0 %54, %v45
    %v56 = vpop.permute.xlu0 %55
    %59 = vset.pattern.permute.xlu0 0
    %60 = vperm.xlu0 %59, %v46
    %v61 = vpop.permute.xlu0 %60
    %64 = vset.pattern.permute.xlu0 0
    %65 = vperm.xlu0 %64, %v47
    %v66 = vpop.permute.xlu0 %65
    %vm68 = vcmask 261120
    %v70 = vsel %vm68, %v24, 0
    %v73 = vsel %vm68, %v25, 0
    %v76 = vsel %vm68, %v26, 0
    %v79 = vsel %vm68, %v27, 0
    %v82 = vsel %vm68, %v28, 0
    %v85 = vsel %vm68, %v29, 0
    %v88 = vsel %vm68, %v30, 0
    %v91 = vsel %vm68, %v31, 0
    %v94 = vsel %vm68, %v32, 0
    %v97 = vsel %vm68, %v33, 0
    %v100 = vsel %vm68, %v34, 0
    %v103 = vsel %vm68, %v35, 0
    %v106 = vsel %vm68, %v36, 0
    %v109 = vsel %vm68, %v37, 0
    %v112 = vsel %vm68, %v38, 0
    %v115 = vsel %vm68, %v39, 0
    %v118 = vsel %vm68, %v40, 0
    %v121 = vsel %vm68, %v41, 0
    %v124 = vsel %vm68, %v42, 0
    %v127 = vsel %vm68, %v43, 0
    %129 = vmatprep.subr.mxu0 0.0
    %130 = vmatpush1.xpose.msra.mxu0 %v82
    %131 = vmatprep.subr.mxu0 0.0
    %132 = vmatpush1.xpose.msra.mxu0 %v85
    %133 = vmatprep.subr.mxu0 0.0
    %134 = vmatpush1.xpose.msra.mxu0 %v88
    %135 = vmatprep.subr.mxu0 0.0
    %136 = vmatpush1.xpose.msra.mxu0 %v91
    %137 = vmatprep.subr.mxu0 0.0
    %138 = vmatpush1.xpose.msra.mxu0 %v94
    %139 = vmatprep.subr.mxu0 0.0
    %140 = vmatpush1.xpose.msra.mxu0 %v97
    %141 = vmatprep.subr.mxu0 0.0
    %142 = vmatpush1.xpose.msra.mxu0 %v100
    %143 = vmatprep.subr.mxu0 0.0
    %144 = vmatpush1.xpose.msra.mxu0 %v103
    %145 = vmatprep.subr.mxu0 0.0
    %146 = vmatpush1.xpose.msra.mxu0 %v106
    %147 = vmatprep.subr.mxu0 0.0
    %148 = vmatpush1.xpose.msra.mxu0 %v109
    %149 = vmatprep.subr.mxu0 0.0
    %150 = vmatpush1.xpose.msra.mxu0 %v112
    %151 = vmatprep.subr.mxu0 0.0
    %152 = vmatpush1.xpose.msra.mxu0 %v115
    %153 = vmatprep.subr.mxu0 0.0
    %154 = vmatpush1.xpose.msra.mxu0 %v118
    %155 = vmatprep.subr.mxu0 0.0
    %156 = vmatpush1.xpose.msra.mxu0 %v121
    %157 = vmatprep.subr.mxu0 0.0
    %158 = vmatpush1.xpose.msra.mxu0 %v124
    %159 = vmatprep.subr.mxu0 0.0
    %160 = vmatpush1.xpose.msra.mxu0 %v127
    %161 = vmatprep.subr.mxu0 0.0
    %162 = vmatpush1.xpose.msra.mxu0 0.0
    %163 = vmatprep.subr.mxu0 0.0
    %164 = vmatpush1.xpose.msra.mxu0 0.0
    %165 = vmatprep.subr.mxu0 0.0
    %166 = vmatpush1.xpose.msra.mxu0 0.0
    %167 = vmatprep.subr.mxu0 0.0
    %168 = vmatpush1.xpose.msra.mxu0 0.0
    %169 = vmatprep.subr.mxu0 0.0
    %170 = vmatpush1.xpose.msra.mxu0 0.0
    %171 = vmatprep.subr.mxu0 0.0
    %172 = vmatpush1.xpose.msra.mxu0 0.0
    %173 = vmatprep.subr.mxu0 0.0
    %174 = vmatpush1.xpose.msra.mxu0 0.0
    %175 = vmatprep.subr.mxu0 0.0
    %176 = vmatpush1.xpose.msra.mxu0 0.0
    %177 = vmatprep.subr.mxu0 0.0
    %178 = vmatpush1.xpose.msra.mxu0 0.0
    %179 = vmatprep.subr.mxu0 0.0
    %180 = vmatpush1.xpose.msra.mxu0 0.0
    %181 = vmatprep.subr.mxu0 0.0
    %182 = vmatpush1.xpose.msra.mxu0 0.0
    %183 = vmatprep.subr.mxu0 0.0
    %184 = vmatpush1.xpose.msra.mxu0 0.0
    %185 = vmatprep.subr.mxu0 0.0
    %186 = vmatpush1.xpose.msra.mxu0 0.0
    %187 = vmatprep.subr.mxu0 0.0
    %188 = vmatpush1.xpose.msra.mxu0 0.0
    %189 = vmatprep.subr.mxu0 0.0
    %190 = vmatpush1.xpose.msra.mxu0 0.0
    %191 = vmatprep.subr.mxu0 0.0
    %192 = vmatpush1.xpose.msra.mxu0 0.0
    %193 = vmatprep.mubr.f32.mxu0 0.0
    %194 = vmatmul.mubr.f32.gmra.mrb[0].mxu0 %v70
    %v195 = vpop.f32.mrb[0].mxu0
    %v196 = vadd.f32 %v51, %v195
    %v197 = vpop.f32.mrb[0].mxu0
    %198 = vmatprep.mubr.f32.mxu0 0.0
    %199 = vmatmul.mubr.f32.gmra.mrb[0].mxu0 %v73
    %v200 = vpop.f32.mrb[0].mxu0
    %v201 = vadd.f32 %v56, %v200
    %v202 = vpop.f32.mrb[0].mxu0
    %203 = vmatprep.mubr.f32.mxu0 0.0
    %204 = vmatmul.mubr.f32.gmra.mrb[0].mxu0 %v76
    %v205 = vpop.f32.mrb[0].mxu0
    %v206 = vadd.f32 %v61, %v205
    %v207 = vpop.f32.mrb[0].mxu0
    %208 = vmatprep.mubr.f32.mxu0 0.0
    %209 = vmatmul.mubr.f32.gmra.mrb[0].mxu0 %v79
    %v210 = vpop.f32.mrb[0].mxu0
    %v211 = vadd.f32 %v66, %v210
    %v212 = vpop.f32.mrb[0].mxu0
    %213 = vdwg.mxu0
    %v214 = vtanh.pop %v196
    %v215 = vtanh.pop %v201
    %v216 = vtanh.pop %v206
    %v217 = vtanh.pop %v211
    %v218 = vld [vmem:[%s4] sm:$0xff]
    %v219 = vld [vmem:[%s4 + $0x8] sm:$0xff]
    %v220 = vld [vmem:[%s4 + $0x10] sm:$0xff]
    %v221 = vld [vmem:[%s4 + $0x18] sm:$0xff]
    %v222 = vld [vmem:[%s5] sm:$0xff]
    %v223 = vld [vmem:[%s5 + $0x8] sm:$0xff]
    %v224 = vld [vmem:[%s5 + $0x10] sm:$0xff]
    %v225 = vld [vmem:[%s5 + $0x18] sm:$0xff]
    %227 = vset.pattern.permute.xlu0 0
    %228 = vperm.xlu0 %227, %v222
    %v229 = vpop.permute.xlu0 %228
    %232 = vset.pattern.permute.xlu0 0
    %233 = vperm.xlu0 %232, %v223
    %v234 = vpop.permute.xlu0 %233
    %237 = vset.pattern.permute.xlu0 0
    %238 = vperm.xlu0 %237, %v224
    %v239 = vpop.permute.xlu0 %238
    %242 = vset.pattern.permute.xlu0 0
    %243 = vperm.xlu0 %242, %v225
    %v244 = vpop.permute.xlu0 %243
    %v247 = vsel %vm68, %v218, 0
    %v250 = vsel %vm68, %v219, 0
    %v253 = vsel %vm68, %v220, 0
    %v256 = vsel %vm68, %v221, 0
    %258 = vmatprep.subr.mxu0 0.0
    %259 = vmatpush1.msra.mxu0 %v214
    %260 = vmatprep.subr.mxu0 0.0
    %261 = vmatpush1.msra.mxu0 %v215
    %262 = vmatprep.subr.mxu0 0.0
    %263 = vmatpush1.msra.mxu0 %v216
    %264 = vmatprep.subr.mxu0 0.0
    %265 = vmatpush1.msra.mxu0 %v217
    %266 = vmatprep.subr.mxu0 0.0
    %267 = vmatpush1.msra.mxu0 0.0
    %268 = vmatprep.subr.mxu0 0.0
    %269 = vmatpush1.msra.mxu0 0.0
    %270 = vmatprep.subr.mxu0 0.0
    %271 = vmatpush1.msra.mxu0 0.0
    %272 = vmatprep.subr.mxu0 0.0
    %273 = vmatpush1.msra.mxu0 0.0
    %274 = vmatprep.subr.mxu0 0.0
    %275 = vmatpush1.msra.mxu0 0.0
    %276 = vmatprep.subr.mxu0 0.0
    %277 = vmatpush1.msra.mxu0 0.0
    %278 = vmatprep.subr.mxu0 0.0
    %279 = vmatpush1.msra.mxu0 0.0
    %280 = vmatprep.subr.mxu0 0.0
    %281 = vmatpush1.msra.mxu0 0.0
    %282 = vmatprep.subr.mxu0 0.0
    %283 = vmatpush1.msra.mxu0 0.0
    %284 = vmatprep.subr.mxu0 0.0
    %285 = vmatpush1.msra.mxu0 0.0
    %286 = vmatprep.subr.mxu0 0.0
    %287 = vmatpush1.msra.mxu0 0.0
    %288 = vmatprep.subr.mxu0 0.0
    %289 = vmatpush1.msra.mxu0 0.0
    %290 = vmatprep.subr.mxu0 0.0
    %291 = vmatpush1.msra.mxu0 0.0
    %292 = vmatprep.subr.mxu0 0.0
    %293 = vmatpush1.msra.mxu0 0.0
    %294 = vmatprep.subr.mxu0 0.0
    %295 = vmatpush1.msra.mxu0 0.0
    %296 = vmatprep.subr.mxu0 0.0
    %297 = vmatpush1.msra.mxu0 0.0
    %298 = vmatprep.subr.mxu0 0.0
    %299 = vmatpush1.msra.mxu0 0.0
    %300 = vmatprep.subr.mxu0 0.0
    %301 = vmatpush1.msra.mxu0 0.0
    %302 = vmatprep.subr.mxu0 0.0
    %303 = vmatpush1.msra.mxu0 0.0
    %304 = vmatprep.subr.mxu0 0.0
    %305 = vmatpush1.msra.mxu0 0.0
    %306 = vmatprep.subr.mxu0 0.0
    %307 = vmatpush1.msra.mxu0 0.0
    %308 = vmatprep.subr.mxu0 0.0
    %309 = vmatpush1.msra.mxu0 0.0
    %310 = vmatprep.subr.mxu0 0.0
    %311 = vmatpush1.msra.mxu0 0.0
    %312 = vmatprep.subr.mxu0 0.0
    %313 = vmatpush1.msra.mxu0 0.0
    %314 = vmatprep.subr.mxu0 0.0
    %315 = vmatpush1.msra.mxu0 0.0
    %316 = vmatprep.subr.mxu0 0.0
    %317 = vmatpush1.msra.mxu0 0.0
    %318 = vmatprep.subr.mxu0 0.0
    %319 = vmatpush1.msra.mxu0 0.0
    %320 = vmatprep.subr.mxu0 0.0
    %321 = vmatpush1.msra.mxu0 0.0
    %322 = vmatprep.mubr.f32.mxu0 0.0
    %323 = vmatmul.mubr.f32.gmra.mrb[0].mxu0 %v247
    %v324 = vpop.f32.mrb[0].mxu0
    %v325 = vadd.f32 %v229, %v324
    %v326 = vpop.f32.mrb[0].mxu0
    %327 = vmatprep.mubr.f32.mxu0 0.0
    %328 = vmatmul.mubr.f32.gmra.mrb[0].mxu0 %v250
    %v329 = vpop.f32.mrb[0].mxu0
    %v330 = vadd.f32 %v234, %v329
    %v331 = vpop.f32.mrb[0].mxu0
    %332 = vmatprep.mubr.f32.mxu0 0.0
    %333 = vmatmul.mubr.f32.gmra.mrb[0].mxu0 %v253
    %v334 = vpop.f32.mrb[0].mxu0
    %v335 = vadd.f32 %v239, %v334
    %v336 = vpop.f32.mrb[0].mxu0
    %337 = vmatprep.mubr.f32.mxu0 0.0
    %338 = vmatmul.mubr.f32.gmra.mrb[0].mxu0 %v256
    %v339 = vpop.f32.mrb[0].mxu0
    %v340 = vadd.f32 %v244, %v339
    %v341 = vpop.f32.mrb[0].mxu0
    %342 = vdwg.mxu0
    %v343 = vld [vmem:[%s0] sm:$0xff]
    %v344 = vld [vmem:[%s0 + $0x8] sm:$0xff]
    %v345 = vsub.f32 %v343, %v325
    %v346 = vsub.f32 %v344, %v330
    %v347 = vsub.f32 0.0, %v335
    %v348 = vsub.f32 0.0, %v340
    %v349 = vmul.f32 %v347, 1.442695
    %v350 = vpow.pop %v349
    %v351 = vmul.f32 %v348, 1.442695
    %v352 = vpow.pop %v351
    %v353 = vmul.f32 %v345, %v345
    %v354 = vmul.f32 %v346, %v346
    %v355 = vmul.f32 %v353, %v350
    %v356 = vmul.f32 %v354, %v352
    %v357 = vadd.f32 %v355, %v335
    %v358 = vadd.f32 %v356, %v340
    %v359 = vadd.f32 %v357, %v358
    %v360 = vrot.slane %v359, 4
    %v361 = vadd.f32 %v359, %v360
    %v362 = vrot.slane %v361, 2
    %v363 = vadd.f32 %v361, %v362
    %v364 = vrot.slane %v363, 1
    %v365 = vadd.f32 %v363, %v364
    %v366 = vmul.f32 %v365, 0.5
    %v367 = vsub.f32 -14.703016, %v366
    %368 = vst [vmem:[#allocation2] sm:$0x1] %v367
    // Predicated region
    $region26: #{tpu_custom_call.1} parent=1 // pred_check
      _
    $region27: #{tpu_custom_call.1} parent=1 // pred_check_branch
      %370 = sbr.rel (0) target = $region29
    $region28: #{tpu_custom_call.1} parent=1 // pred_region
      %s372 = ssub.s32 16, 16
      %373 = vsyncadd [#allocation3], %s372
      %s375 = sshll.u32 [#allocation2], 4
      %s376 = int_to_ptr.vmem [resolvable:$true] %s375
      %378 = dma.vmem_to_hbm [thread:$0]  %s376, 16, %s6, [#allocation3]
    $region29: #{tpu_custom_call.1} parent=1 // pred_fallthru
      _
    // Predicated region
    $region30: #{tpu_custom_call.1} parent=1 // pred_check
      _
    $region31: #{tpu_custom_call.1} parent=1 // pred_check_branch
      %380 = sbr.rel (0) target = $region33
    $region32: #{tpu_custom_call.1} parent=1 // pred_region
      %381 = dma.done [#allocation3], 16
    $region33: #{tpu_custom_call.1} parent=1 // pred_fallthru
      _
    %382 = vsyncpa [#allocation3], 1

</llo_original>
